<compile_context>
chip_gen: v6e
topology: v6e:2x2x1
jax: 0.10.0
libtpu: 0.0.40
codegen_flags: <defaults>
</compile_context>

<pallas_src>
import jax
import jax.numpy as jnp
import numpy as np
from jax.experimental import pallas as pl
from jax.experimental.pallas import tpu as pltpu


def _round_up(n, m):
    return ((n + m - 1) // m) * m


def _pick_gate_tile(hg):
    # Largest lane tile (per gate) <= 512 that divides the padded gate width.
    for tn in (512, 256, 128):
        if hg % tn == 0:
            return tn
    return hg  # unreachable: hg is a multiple of 128


# ---------------------------------------------------------------------------
# Kernel: one grid step computes a complete TN-lane slice of r/c/a/u_new.
# ---------------------------------------------------------------------------
def egsnp_kernel(xu_ref, h_ref, u_ref, wxu_ref, wh_ref, b_ref, out_ref):
    f32 = jnp.float32
    tn = u_ref.shape[1]  # per-gate lane-tile width (multiple of 128)

    # (bs, 3*TN): lanes [0:TN)=r, [TN:2TN)=c, [2TN:3TN)=a  (x and u fused in K)
    pre = (jnp.dot(xu_ref[...], wxu_ref[...], preferred_element_type=f32)
           + b_ref[...])
    # h only feeds r and c -> add a (bs, 2*TN) contribution.
    rc = pre[:, :2 * tn] + jnp.dot(h_ref[...], wh_ref[...],
                                   preferred_element_type=f32)

    r_t = jax.nn.sigmoid(rc[:, :tn])
    c_t = jax.nn.sigmoid(rc[:, tn:])
    a_t = jnp.tanh(pre[:, 2 * tn:])

    u_new = r_t * u_ref[...].astype(f32) - c_t * a_t

    # Lane-dense output tile: [ h_t (=a) | u_new ], each TN wide / 128-aligned.
    out_ref[:, :tn] = a_t.astype(out_ref.dtype)
    out_ref[:, tn:] = u_new.astype(out_ref.dtype)


# ---------------------------------------------------------------------------
# One-time parameter preparation (fuse / transpose / pad / regroup / cast)
# ---------------------------------------------------------------------------
def prepare_egsnp_weights(params, compute_dtype=jnp.bfloat16):
    H, In = params["W_ir"].shape
    Hg = _round_up(H, 128)                       # padded per-gate lane width
    sub = 16 if compute_dtype == jnp.bfloat16 else 8
    Kp = _round_up(In, sub)                      # input features: sublane pad only
    TN = _pick_gate_tile(Hg)
    n_tiles = Hg // TN

    def pad2(w, rows, cols):
        w = jnp.asarray(w, jnp.float32)
        return jnp.pad(w, ((0, rows - w.shape[0]), (0, cols - w.shape[1])))

    # Right-multiplication orientation matching the PyTorch expressions:
    #   W_ir, W_hr, W_ic, W_hc, W_ia, W_ua are used with .t()  -> transpose here.
    #   W_ur, W_uc are used WITHOUT transpose                  -> keep as-is.
    wx_r = pad2(params["W_ir"].T, Kp, Hg)
    wx_c = pad2(params["W_ic"].T, Kp, Hg)
    wx_a = pad2(params["W_ia"].T, Kp, Hg)
    wu_r = pad2(params["W_ur"],   Hg, Hg)
    wu_c = pad2(params["W_uc"],   Hg, Hg)
    wu_a = pad2(params["W_ua"].T, Hg, Hg)
    wh_r = pad2(params["W_hr"].T, Hg, Hg)
    wh_c = pad2(params["W_hc"].T, Hg, Hg)

    # Fuse x and u along the contraction dim: (Kp+Hg, Hg) per gate.
    wxu_r = jnp.concatenate([wx_r, wu_r], axis=0)
    wxu_c = jnp.concatenate([wx_c, wu_c], axis=0)
    wxu_a = jnp.concatenate([wx_a, wu_a], axis=0)

    def regroup_cols(gates):
        # list of (K, Hg) -> (K, n_tiles * n_gates * TN) with per-tile layout
        # [gate0_tile_j | gate1_tile_j | ...] so one lane-tile BlockSpec grabs
        # all gate columns for that tile.
        k = gates[0].shape[0]
        stacked = jnp.stack([g.reshape(k, n_tiles, TN) for g in gates], axis=2)
        return stacked.reshape(k, n_tiles * len(gates) * TN)

    wxu = regroup_cols([wxu_r, wxu_c, wxu_a]).astype(compute_dtype)  # (Kp+Hg, 3*Hg)
    wh = regroup_cols([wh_r, wh_c]).astype(compute_dtype)            # (Hg,    2*Hg)

    def padb(b):
        b = jnp.asarray(b, jnp.float32)
        return jnp.pad(b, (0, Hg - b.shape[0]))

    b_r = padb(params["b_ir"] + params["b_hr"] + params["b_ur"])
    b_c = padb(params["b_ic"] + params["b_hc"] + params["b_uc"])
    b_a = padb(params["b_ia"] + params["b_ua"])
    bias = jnp.stack([b_r.reshape(n_tiles, TN),
                      b_c.reshape(n_tiles, TN),
                      b_a.reshape(n_tiles, TN)], axis=1).reshape(1, 3 * Hg)  # f32

    return {"Wxu": wxu, "Wh": wh, "bias": bias,
            "hidden": H, "hidden_pad": Hg, "input": In, "input_pad": Kp,
            "tile_n": TN, "n_tiles": n_tiles, "compute_dtype": compute_dtype}


# ---------------------------------------------------------------------------
# Forward wrapper
# ---------------------------------------------------------------------------
def egsnp_cell_forward(x, fused, init_states=None):
    """x: (bs, input_size) f32. Returns (h_t, u_t), each (bs, hidden_size) f32."""
    bs, in_size = x.shape
    assert in_size == fused["input"]
    H, Hg, Kp = fused["hidden"], fused["hidden_pad"], fused["input_pad"]
    TN, n_tiles = fused["tile_n"], fused["n_tiles"]
    cdt = fused["compute_dtype"]
    sub = 16 if cdt == jnp.bfloat16 else 8
    bs_pad = _round_up(bs, sub)
    K_total = Kp + Hg

    if init_states is None:
        h0 = jnp.zeros((bs, H), jnp.float32)
        u0 = jnp.zeros((bs, H), jnp.float32)
    else:
        h0, u0 = init_states
        h0 = jnp.broadcast_to(h0, (bs, H)).astype(jnp.float32)
        u0 = jnp.broadcast_to(u0, (bs, H)).astype(jnp.float32)

    # Fused [x | u] activation (contraction operand of the Wxu matmul).
    xu = jnp.zeros((bs_pad, K_total), cdt)
    xu = xu.at[:bs, :in_size].set(x.astype(cdt))
    xu = xu.at[:bs, Kp:Kp + H].set(u0.astype(cdt))

    h_p = jnp.zeros((bs_pad, Hg), cdt).at[:bs, :H].set(h0.astype(cdt))
    u_p = jnp.zeros((bs_pad, Hg), cdt).at[:bs, :H].set(u0.astype(cdt))

    itemsize = jnp.dtype(cdt).itemsize
    weight_bytes = int(fused["Wxu"].size + fused["Wh"].size) * itemsize
    act_bytes = int(xu.size + h_p.size + u_p.size) * itemsize
    out_bytes = int(bs_pad * 2 * Hg) * 4
    cost = pl.CostEstimate(
        flops=int(2 * bs_pad * (K_total * 3 * Hg + Hg * 2 * Hg)),
        transcendentals=int(3 * bs_pad * Hg),
        bytes_accessed=weight_bytes + act_bytes + out_bytes + int(fused["bias"].size) * 4,
    )

    out = pl.pallas_call(
        egsnp_kernel,
        out_shape=jax.ShapeDtypeStruct((bs_pad, 2 * Hg), jnp.float32),
        grid=(n_tiles,),
        in_specs=[
            pl.BlockSpec((bs_pad, K_total), lambda j: (0, 0)),   # [x|u], resident
            pl.BlockSpec((bs_pad, Hg),      lambda j: (0, 0)),   # h,     resident
            pl.BlockSpec((bs_pad, TN),      lambda j: (0, j)),   # u lane tile
            pl.BlockSpec((K_total, 3 * TN), lambda j: (0, j)),   # Wxu column tile
            pl.BlockSpec((Hg, 2 * TN),      lambda j: (0, j)),   # Wh  column tile
            pl.BlockSpec((1, 3 * TN),       lambda j: (0, j)),   # bias tile
        ],
        out_specs=pl.BlockSpec((bs_pad, 2 * TN), lambda j: (0, j)),
        compiler_params=pltpu.CompilerParams(
            dimension_semantics=("parallel",),
            vmem_limit_bytes=64 * 1024 * 1024),
        cost_estimate=cost,
    )(xu, h_p, u_p, fused["Wxu"], fused["Wh"], fused["bias"])

    # Output lane layout is [tile0: a | u_new, tile1: a | u_new, ...].
    out_r = out.reshape(bs_pad, n_tiles, 2, TN)
    h_full = out_r[:, :, 0, :].reshape(bs_pad, Hg)
    u_full = out_r[:, :, 1, :].reshape(bs_pad, Hg)
    return h_full[:bs, :H], u_full[:bs, :H]


# ---------------------------------------------------------------------------
# Parameter init + pure-JAX reference (mirrors the PyTorch module exactly)
# ---------------------------------------------------------------------------
def _xavier_uniform(key, shape):
    fan_out, fan_in = shape
    limit = float(np.sqrt(6.0 / (fan_in + fan_out)))
    return jax.random.uniform(key, shape, jnp.float32, -limit, limit)


def init_egsnp_params(key, input_size, hidden_size):
    shapes_2d = {
        "W_ir": (hidden_size, input_size),
        "W_hr": (hidden_size, hidden_size),
        "W_ur": (hidden_size, hidden_size),
        "W_ic": (hidden_size, input_size),
        "W_hc": (hidden_size, hidden_size),
        "W_uc": (hidden_size, hidden_size),
        "W_ia": (hidden_size, input_size),
        "W_ua": (hidden_size, hidden_size),
    }
    names = list(shapes_2d)
    keys = jax.random.split(key, len(names))
    params = {n: _xavier_uniform(k, shapes_2d[n]) for n, k in zip(names, keys)}
    for b in ["b_ir", "b_hr", "b_ur", "b_ic", "b_hc", "b_uc", "b_ia", "b_ua"]:
        params[b] = jnp.zeros((hidden_size,), jnp.float32)
    return params


def egsnp_reference(x, params, init_states=None):
    hidden = params["W_ir"].shape[0]
    if init_states is None:
        h_t = jnp.zeros((hidden,), jnp.float32)
        u_t = jnp.zeros((hidden,), jnp.float32)
    else:
        h_t, u_t = init_states
    r_t = jax.nn.sigmoid(x @ params["W_ir"].T + params["b_ir"]
                         + h_t @ params["W_hr"].T + params["b_hr"]
                         + u_t @ params["W_ur"] + params["b_ur"])
    c_t = jax.nn.sigmoid(x @ params["W_ic"].T + params["b_ic"]
                         + h_t @ params["W_hc"].T + params["b_hc"]
                         + u_t @ params["W_uc"] + params["b_uc"])
    a = jnp.tanh(x @ params["W_ia"].T + params["b_ia"]
                 + u_t @ params["W_ua"].T + params["b_ua"])
    u_new = r_t * u_t - c_t * a
    return a, u_new


# ---------------------------------------------------------------------------
# Test
# ---------------------------------------------------------------------------
if __name__ == "__main__":
    key = jax.random.PRNGKey(0)
    k_params, k_x, k_h, k_u = jax.random.split(key, 4)

    batch, input_size, hidden_size = 8, 16, 32
    params = init_egsnp_params(k_params, input_size, hidden_size)
    x = jax.random.normal(k_x, (batch, input_size), jnp.float32)
    h0 = jax.random.normal(k_h, (batch, hidden_size), jnp.float32)
    u0 = jax.random.normal(k_u, (batch, hidden_size), jnp.float32)

    h_ref0, u_ref0 = egsnp_reference(x, params)                 # zero init states
    h_ref1, u_ref1 = egsnp_reference(x, params, (h0, u0))       # non-zero states

    # --- f32 compute path: tight parity with the f32 reference ----------------
    fused_f32 = prepare_egsnp_weights(params, compute_dtype=jnp.float32)

    h_t, u_t = egsnp_cell_forward(x, fused_f32)
    jax.block_until_ready((h_t, u_t))
    assert h_t.shape == (batch, hidden_size) and u_t.shape == (batch, hidden_size)
    np.testing.assert_allclose(np.asarray(h_t),
                               np.asarray(jnp.broadcast_to(h_ref0, h_t.shape)),
                               rtol=1e-5, atol=1e-5)
    np.testing.assert_allclose(np.asarray(u_t),
                               np.asarray(jnp.broadcast_to(u_ref0, u_t.shape)),
                               rtol=1e-5, atol=1e-5)

    h_t2, u_t2 = egsnp_cell_forward(x, fused_f32, (h0, u0))
    jax.block_until_ready((h_t2, u_t2))
    np.testing.assert_allclose(np.asarray(h_t2), np.asarray(h_ref1), rtol=1e-5, atol=1e-5)
    np.testing.assert_allclose(np.asarray(u_t2), np.asarray(u_ref1), rtol=1e-5, atol=1e-5)

    # --- bf16 compute path (production default): relaxed tolerance ------------
    fused_bf16 = prepare_egsnp_weights(params, compute_dtype=jnp.bfloat16)

    h_b, u_b = egsnp_cell_forward(x, fused_bf16)
    jax.block_until_ready((h_b, u_b))
    np.testing.assert_allclose(np.asarray(h_b),
                               np.asarray(jnp.broadcast_to(h_ref0, h_b.shape)),
                               rtol=5e-2, atol=5e-2)
    np.testing.assert_allclose(np.asarray(u_b),
                               np.asarray(jnp.broadcast_to(u_ref0, u_b.shape)),
                               rtol=5e-2, atol=5e-2)

    h_b2, u_b2 = egsnp_cell_forward(x, fused_bf16, (h0, u0))
    jax.block_until_ready((h_b2, u_b2))
    np.testing.assert_allclose(np.asarray(h_b2), np.asarray(h_ref1), rtol=5e-2, atol=5e-2)
    np.testing.assert_allclose(np.asarray(u_b2), np.asarray(u_ref1), rtol=5e-2, atol=5e-2)

    print("KERNEL_OK")
</pallas_src>

<mosaic_0001>
module attributes {stable_mosaic.version = 11 : i64} {
  func.func @egsnp_kernel(%arg0: i32, %arg1: memref<8x144xf32, #tpu.memory_space<vmem>>, %arg2: memref<8x128xf32, #tpu.memory_space<vmem>>, %arg3: memref<8x128xf32, #tpu.memory_space<vmem>>, %arg4: memref<144x384xf32, #tpu.memory_space<vmem>>, %arg5: memref<128x256xf32, #tpu.memory_space<vmem>>, %arg6: memref<1x384xf32, #tpu.memory_space<vmem>>, %arg7: memref<8x256xf32, #tpu.memory_space<vmem>>) attributes {dimension_semantics = [#tpu.dimension_semantics<parallel>], iteration_bounds = array<i64: 1>, scalar_prefetch = 0 : i64, scratch_operands = 0 : i64, tpu.core_type = #tpu.core_type<tc>, window_params = [{pipeline_mode = #tpu.pipeline_mode<synchronous>, transform_indices = @transform_0, window_bounds = array<i64: 8, 144>}, {pipeline_mode = #tpu.pipeline_mode<synchronous>, transform_indices = @transform_1, window_bounds = array<i64: 8, 128>}, {transform_indices = @transform_2, window_bounds = array<i64: 8, 128>}, {transform_indices = @transform_3, window_bounds = array<i64: 144, 384>}, {transform_indices = @transform_4, window_bounds = array<i64: 128, 256>}, {transform_indices = @transform_5, window_bounds = array<i64: 1, 384>}, {transform_indices = @transform_6, window_bounds = array<i64: 8, 256>}]} {
    %c0 = arith.constant 0 : index
    %c0_0 = arith.constant 0 : index
    %0 = vector.load %arg1[%c0, %c0_0] : memref<8x144xf32, #tpu.memory_space<vmem>>, vector<8x144xf32>
    %c0_1 = arith.constant 0 : index
    %c0_2 = arith.constant 0 : index
    %1 = vector.load %arg4[%c0_1, %c0_2] : memref<144x384xf32, #tpu.memory_space<vmem>>, vector<144x384xf32>
    %cst = arith.constant dense<0.000000e+00> : vector<8x384xf32>
    %2 = tpu.matmul %0, %1, %cst {dimension_numbers = #tpu.dot_dimension_numbers<[1], [0], [0], [1], [0, 0, 1, 1], [], []>} : vector<8x144xf32>, vector<144x384xf32>, vector<8x384xf32> -> vector<8x384xf32>
    %c0_3 = arith.constant 0 : index
    %c0_4 = arith.constant 0 : index
    %3 = vector.load %arg6[%c0_3, %c0_4] : memref<1x384xf32, #tpu.memory_space<vmem>>, vector<1x384xf32>
    %4 = vector.broadcast %3 : vector<1x384xf32> to vector<8x384xf32>
    %5 = arith.addf %2, %4 : vector<8x384xf32>
    %6 = vector.extract_strided_slice %5 {offsets = [0, 0], sizes = [8, 256], strides = [1, 1]} : vector<8x384xf32> to vector<8x256xf32>
    %c0_5 = arith.constant 0 : index
    %c0_6 = arith.constant 0 : index
    %7 = vector.load %arg2[%c0_5, %c0_6] : memref<8x128xf32, #tpu.memory_space<vmem>>, vector<8x128xf32>
    %c0_7 = arith.constant 0 : index
    %c0_8 = arith.constant 0 : index
    %8 = vector.load %arg5[%c0_7, %c0_8] : memref<128x256xf32, #tpu.memory_space<vmem>>, vector<128x256xf32>
    %cst_9 = arith.constant dense<0.000000e+00> : vector<8x256xf32>
    %9 = tpu.matmul %7, %8, %cst_9 {dimension_numbers = #tpu.dot_dimension_numbers<[1], [0], [0], [1], [0, 0, 1, 1], [], []>} : vector<8x128xf32>, vector<128x256xf32>, vector<8x256xf32> -> vector<8x256xf32>
    %10 = arith.addf %6, %9 : vector<8x256xf32>
    %11 = vector.extract_strided_slice %10 {offsets = [0, 0], sizes = [8, 128], strides = [1, 1]} : vector<8x256xf32> to vector<8x128xf32>
    %12 = arith.negf %11 : vector<8x128xf32>
    %13 = math.exp %12 : vector<8x128xf32>
    %cst_10 = arith.constant 1.000000e+00 : f32
    %14 = vector.broadcast %cst_10 : f32 to vector<8x128xf32>
    %15 = arith.addf %14, %13 : vector<8x128xf32>
    %16 = arith.divf %14, %15 : vector<8x128xf32>
    %17 = vector.extract_strided_slice %10 {offsets = [0, 128], sizes = [8, 128], strides = [1, 1]} : vector<8x256xf32> to vector<8x128xf32>
    %18 = arith.negf %17 : vector<8x128xf32>
    %19 = math.exp %18 : vector<8x128xf32>
    %cst_11 = arith.constant 1.000000e+00 : f32
    %20 = vector.broadcast %cst_11 : f32 to vector<8x128xf32>
    %21 = arith.addf %20, %19 : vector<8x128xf32>
    %22 = arith.divf %20, %21 : vector<8x128xf32>
    %23 = vector.extract_strided_slice %5 {offsets = [0, 256], sizes = [8, 128], strides = [1, 1]} : vector<8x384xf32> to vector<8x128xf32>
    %24 = math.tanh %23 : vector<8x128xf32>
    %c0_12 = arith.constant 0 : index
    %c0_13 = arith.constant 0 : index
    %25 = vector.load %arg3[%c0_12, %c0_13] : memref<8x128xf32, #tpu.memory_space<vmem>>, vector<8x128xf32>
    %26 = arith.mulf %16, %25 : vector<8x128xf32>
    %27 = arith.mulf %22, %24 : vector<8x128xf32>
    %28 = arith.subf %26, %27 : vector<8x128xf32>
    %c0_14 = arith.constant 0 : index
    %c0_15 = arith.constant 0 : index
    %29 = vector.load %arg7[%c0_14, %c0_15] : memref<8x256xf32, #tpu.memory_space<vmem>>, vector<8x128xf32>
    tpu.vector_store %arg7[%c0_14, %c0_15], %24 {strides = array<i32>} : memref<8x256xf32, #tpu.memory_space<vmem>>, vector<8x128xf32>,
    %c0_16 = arith.constant 0 : index
    %c128 = arith.constant 128 : index
    %30 = vector.load %arg7[%c0_16, %c128] : memref<8x256xf32, #tpu.memory_space<vmem>>, vector<8x128xf32>
    tpu.vector_store %arg7[%c0_16, %c128], %28 {strides = array<i32>} : memref<8x256xf32, #tpu.memory_space<vmem>>, vector<8x128xf32>,
    return
  }
  func.func @transform_0(%arg0: i32) -> (i32, i32) {
    %c0_i32 = arith.constant 0 : i32
    %c0_i32_0 = arith.constant 0 : i32
    %c0_i32_1 = arith.constant 0 : i32
    return %c0_i32, %c0_i32_0 : i32, i32
  }
  func.func @transform_1(%arg0: i32) -> (i32, i32) {
    %c0_i32 = arith.constant 0 : i32
    %c0_i32_0 = arith.constant 0 : i32
    %c0_i32_1 = arith.constant 0 : i32
    return %c0_i32, %c0_i32_0 : i32, i32
  }
  func.func @transform_2(%arg0: i32) -> (i32, i32) {
    %c0_i32 = arith.constant 0 : i32
    %c0_i32_0 = arith.constant 0 : i32
    return %c0_i32, %arg0 : i32, i32
  }
  func.func @transform_3(%arg0: i32) -> (i32, i32) {
    %c0_i32 = arith.constant 0 : i32
    %c0_i32_0 = arith.constant 0 : i32
    return %c0_i32, %arg0 : i32, i32
  }
  func.func @transform_4(%arg0: i32) -> (i32, i32) {
    %c0_i32 = arith.constant 0 : i32
    %c0_i32_0 = arith.constant 0 : i32
    return %c0_i32, %arg0 : i32, i32
  }
  func.func @transform_5(%arg0: i32) -> (i32, i32) {
    %c0_i32 = arith.constant 0 : i32
    %c0_i32_0 = arith.constant 0 : i32
    return %c0_i32, %arg0 : i32, i32
  }
  func.func @transform_6(%arg0: i32) -> (i32, i32) {
    %c0_i32 = arith.constant 0 : i32
    %c0_i32_0 = arith.constant 0 : i32
    return %c0_i32, %arg0 : i32, i32
  }
}

</mosaic_0001>

<llo_original>
// kernel: tpu_custom_call.1
$region0: #{tpu_custom_call.1}
  #allocation0 [shape = 'u32[]', space=smem, size = 0x4, offset = 0x4, fixed_abs, tag = 'smem constant byte address 0x4 - core index']
  #allocation1 [shape = 'u32[144,128]{1,0:T(1,128)}', space=vmem, size = 0x12000, scoped, tag = 'internal scratch']
  %s0 = inlined_call_operand.hbm [shape: f32[8,144], index: 0, kind: input, shape index: {}]
  %s1 = inlined_call_operand.hbm [shape: f32[8,128], index: 1, kind: input, shape index: {}]
  %s2 = inlined_call_operand.hbm [shape: f32[8,128], index: 2, kind: input, shape index: {}]
  %s3 = inlined_call_operand.hbm [shape: f32[144,384], index: 3, kind: input, shape index: {}]
  %s4 = inlined_call_operand.hbm [shape: f32[128,256], index: 4, kind: input, shape index: {}]
  %s5 = inlined_call_operand.vmem [shape: f32[1,384], index: 5, kind: input, shape index: {}]
  %s6 = inlined_call_operand.hbm [shape: f32[8,256], index: 6, kind: output, shape index: {}]
  %s7 = sld [smem:[#allocation0]]
  $region54: #{tpu_custom_call.1} parent=0
    _
  %s9 = ssub.s32 1, %s7
  %s10 = scalar_select 0, %s9, %s7
  $region1: #{tpu_custom_call.1} parent=0
    #allocation2 [shape = 'u8[8192]{0}', space=vmem, size = 0x2000, scoped, tag = 'input window, operand 0, single buffered']
    #allocation3 [shape = 's32[1]{0}', space=sflag, size = 0x4, scoped, tag = 'scoped memory for tpu_custom_call.1']
    #allocation4 [shape = 's32[1]{0}', space=sflag, size = 0x4, scoped, tag = 'scoped memory for tpu_custom_call.1']
    #allocation5 [shape = 'u8[4096]{0}', space=vmem, size = 0x1000, scoped, tag = 'input window, operand 1, single buffered']
    #allocation6 [shape = 's32[1]{0}', space=sflag, size = 0x4, scoped, tag = 'scoped memory for tpu_custom_call.1']
    #allocation7 [shape = 'u8[4096]{0}', space=vmem, size = 0x1000, scoped, tag = 'input window, operand 2, single buffered']
    #allocation8 [shape = 'u8[221184]{0}', space=vmem, size = 0x36000, scoped, tag = 'input window, operand 3, single buffered']
    #allocation9 [shape = 's32[1]{0}', space=sflag, size = 0x4, scoped, tag = 'scoped memory for tpu_custom_call.1']
    #allocation10 [shape = 'u8[131072]{0}', space=vmem, size = 0x20000, scoped, tag = 'input window, operand 4, single buffered']
    #allocation11 [shape = 'u8[8192]{0}', space=vmem, size = 0x2000, scoped, tag = 'output window, operand 0, single buffered']
    %11 = vsyncpa [#allocation3], 0
    %12 = vsyncpa [#allocation6], 0
    %13 = vsyncpa [#allocation9], 0
    %14 = vsyncpa [#allocation4], 0
    // Predicated region
    $region2: #{tpu_custom_call.1} parent=1 // pred_check
      _
    $region3: #{tpu_custom_call.1} parent=1 // pred_check_branch
      %16 = sbr.rel (0) target = $region5
    $region4: #{tpu_custom_call.1} parent=1 // pred_region
      %s18 = ssub.s32 256, 256
      %19 = vsyncadd [#allocation3], %s18
      %s21 = sshll.u32 [#allocation2], 4
      %s22 = int_to_ptr.vmem [resolvable:$true] %s21
      %24 = dma.hbm_to_vmem [thread:$0]  %s0, 256, %s22, [#allocation3]
    $region5: #{tpu_custom_call.1} parent=1 // pred_fallthru
      _
    // Predicated region
    $region6: #{tpu_custom_call.1} parent=1 // pred_check
      _
    $region7: #{tpu_custom_call.1} parent=1 // pred_check_branch
      %26 = sbr.rel (0) target = $region9
    $region8: #{tpu_custom_call.1} parent=1 // pred_region
      %s28 = ssub.s32 128, 128
      %29 = vsyncadd [#allocation6], %s28
      %s31 = sshll.u32 [#allocation5], 4
      %s32 = int_to_ptr.vmem [resolvable:$true] %s31
      %34 = dma.hbm_to_vmem [thread:$0]  %s1, 128, %s32, [#allocation6]
    $region9: #{tpu_custom_call.1} parent=1 // pred_fallthru
      _
    // Predicated region
    $region10: #{tpu_custom_call.1} parent=1 // pred_check
      _
    $region11: #{tpu_custom_call.1} parent=1 // pred_check_branch
      %36 = sbr.rel (0) target = $region13
    $region12: #{tpu_custom_call.1} parent=1 // pred_region
      %s38 = ssub.s32 128, 128
      %39 = vsyncadd [#allocation6], %s38
      %s41 = sshll.u32 [#allocation7], 4
      %s42 = int_to_ptr.vmem [resolvable:$true] %s41
      %44 = dma.hbm_to_vmem [thread:$0]  %s2, 128, %s42, [#allocation6]
    $region13: #{tpu_custom_call.1} parent=1 // pred_fallthru
      _
    // Predicated region
    $region14: #{tpu_custom_call.1} parent=1 // pred_check
      _
    $region15: #{tpu_custom_call.1} parent=1 // pred_check_branch
      %46 = sbr.rel (0) target = $region17
    $region16: #{tpu_custom_call.1} parent=1 // pred_region
      %s48 = ssub.s32 6912, 6912
      %49 = vsyncadd [#allocation9], %s48
      %s50 = sshll.u32 [#allocation8], 4
      %s51 = int_to_ptr.vmem [resolvable:$true] %s50
      %56 = dma.hbm_to_vmem [thread:$0]  %s3, 6912, %s51, [#allocation9], 384, 384, 24
    $region17: #{tpu_custom_call.1} parent=1 // pred_fallthru
      _
    // Predicated region
    $region18: #{tpu_custom_call.1} parent=1 // pred_check
      _
    $region19: #{tpu_custom_call.1} parent=1 // pred_check_branch
      %58 = sbr.rel (0) target = $region21
    $region20: #{tpu_custom_call.1} parent=1 // pred_region
      %s60 = ssub.s32 4096, 4096
      %61 = vsyncadd [#allocation9], %s60
      %s62 = sshll.u32 [#allocation10], 4
      %s63 = int_to_ptr.vmem [resolvable:$true] %s62
      %68 = dma.hbm_to_vmem [thread:$0]  %s4, 4096, %s63, [#allocation9], 256, 256, 16
    $region21: #{tpu_custom_call.1} parent=1 // pred_fallthru
      _
    // Predicated region
    $region22: #{tpu_custom_call.1} parent=1 // pred_check
      _
    $region23: #{tpu_custom_call.1} parent=1 // pred_check_branch
      %70 = sbr.rel (0) target = $region25
    $region24: #{tpu_custom_call.1} parent=1 // pred_region
      _
    $region25: #{tpu_custom_call.1} parent=1 // pred_fallthru
      _
    // Predicated region
    $region26: #{tpu_custom_call.1} parent=1 // pred_check
      _
    $region27: #{tpu_custom_call.1} parent=1 // pred_check_branch
      %72 = sbr.rel (0) target = $region29
    $region28: #{tpu_custom_call.1} parent=1 // pred_region
      %73 = dma.done [#allocation3], 256
    $region29: #{tpu_custom_call.1} parent=1 // pred_fallthru
      _
    // Predicated region
    $region30: #{tpu_custom_call.1} parent=1 // pred_check
      _
    $region31: #{tpu_custom_call.1} parent=1 // pred_check_branch
      %75 = sbr.rel (0) target = $region33
    $region32: #{tpu_custom_call.1} parent=1 // pred_region
      %76 = dma.done [#allocation6], 128
    $region33: #{tpu_custom_call.1} parent=1 // pred_fallthru
      _
    // Predicated region
    $region34: #{tpu_custom_call.1} parent=1 // pred_check
      _
    $region35: #{tpu_custom_call.1} parent=1 // pred_check_branch
      %78 = sbr.rel (0) target = $region37
    $region36: #{tpu_custom_call.1} parent=1 // pred_region
      %79 = dma.done [#allocation6], 128
    $region37: #{tpu_custom_call.1} parent=1 // pred_fallthru
      _
    // Predicated region
    $region38: #{tpu_custom_call.1} parent=1 // pred_check
      _
    $region39: #{tpu_custom_call.1} parent=1 // pred_check_branch
      %81 = sbr.rel (0) target = $region41
    $region40: #{tpu_custom_call.1} parent=1 // pred_region
      %82 = dma.done [#allocation9], 6912
    $region41: #{tpu_custom_call.1} parent=1 // pred_fallthru
      _
    // Predicated region
    $region42: #{tpu_custom_call.1} parent=1 // pred_check
      _
    $region43: #{tpu_custom_call.1} parent=1 // pred_check_branch
      %84 = sbr.rel (0) target = $region45
    $region44: #{tpu_custom_call.1} parent=1 // pred_region
      %85 = dma.done [#allocation9], 4096
    $region45: #{tpu_custom_call.1} parent=1 // pred_fallthru
      _
    %v86 = vld [vmem:[#allocation2] sm:$0xff]
    %v87 = vld [vmem:[#allocation2 + $0x8] sm:$0xff]
    %v88 = vld [vmem:[#allocation8] sm:$0xff]
    %v89 = vld [vmem:[#allocation8 + $0x8] sm:$0xff]
    %v90 = vld [vmem:[#allocation8 + $0x10] sm:$0xff]
    %v91 = vld [vmem:[#allocation8 + $0x18] sm:$0xff]
    %v92 = vld [vmem:[#allocation8 + $0x20] sm:$0xff]
    %v93 = vld [vmem:[#allocation8 + $0x28] sm:$0xff]
    %v94 = vld [vmem:[#allocation8 + $0x30] sm:$0xff]
    %v95 = vld [vmem:[#allocation8 + $0x38] sm:$0xff]
    %v96 = vld [vmem:[#allocation8 + $0x40] sm:$0xff]
    %v97 = vld [vmem:[#allocation8 + $0x48] sm:$0xff]
    %v98 = vld [vmem:[#allocation8 + $0x50] sm:$0xff]
    %v99 = vld [vmem:[#allocation8 + $0x58] sm:$0xff]
    %v100 = vld [vmem:[#allocation8 + $0x60] sm:$0xff]
    %v101 = vld [vmem:[#allocation8 + $0x68] sm:$0xff]
    %v102 = vld [vmem:[#allocation8 + $0x70] sm:$0xff]
    %v103 = vld [vmem:[#allocation8 + $0x78] sm:$0xff]
    %v104 = vld [vmem:[#allocation8 + $0x80] sm:$0xff]
    %v105 = vld [vmem:[#allocation8 + $0x88] sm:$0xff]
    %v106 = vld [vmem:[#allocation8 + $0x90] sm:$0xff]
    %v107 = vld [vmem:[#allocation8 + $0x98] sm:$0xff]
    %v108 = vld [vmem:[#allocation8 + $0xa0] sm:$0xff]
    %v109 = vld [vmem:[#allocation8 + $0xa8] sm:$0xff]
    %v110 = vld [vmem:[#allocation8 + $0xb0] sm:$0xff]
    %v111 = vld [vmem:[#allocation8 + $0xb8] sm:$0xff]
    %v112 = vld [vmem:[#allocation8 + $0xc0] sm:$0xff]
    %v113 = vld [vmem:[#allocation8 + $0xc8] sm:$0xff]
    %v114 = vld [vmem:[#allocation8 + $0xd0] sm:$0xff]
    %v115 = vld [vmem:[#allocation8 + $0xd8] sm:$0xff]
    %v116 = vld [vmem:[#allocation8 + $0xe0] sm:$0xff]
    %v117 = vld [vmem:[#allocation8 + $0xe8] sm:$0xff]
    %v118 = vld [vmem:[#allocation8 + $0xf0] sm:$0xff]
    %v119 = vld [vmem:[#allocation8 + $0xf8] sm:$0xff]
    %v120 = vld [vmem:[#allocation8 + $0x100] sm:$0xff]
    %v121 = vld [vmem:[#allocation8 + $0x108] sm:$0xff]
    %v122 = vld [vmem:[#allocation8 + $0x110] sm:$0xff]
    %v123 = vld [vmem:[#allocation8 + $0x118] sm:$0xff]
    %v124 = vld [vmem:[#allocation8 + $0x120] sm:$0xff]
    %v125 = vld [vmem:[#allocation8 + $0x128] sm:$0xff]
    %v126 = vld [vmem:[#allocation8 + $0x130] sm:$0xff]
    %v127 = vld [vmem:[#allocation8 + $0x138] sm:$0xff]
    %v128 = vld [vmem:[#allocation8 + $0x140] sm:$0xff]
    %v129 = vld [vmem:[#allocation8 + $0x148] sm:$0xff]
    %v130 = vld [vmem:[#allocation8 + $0x150] sm:$0xff]
    %v131 = vld [vmem:[#allocation8 + $0x158] sm:$0xff]
    %v132 = vld [vmem:[#allocation8 + $0x160] sm:$0xff]
    %v133 = vld [vmem:[#allocation8 + $0x168] sm:$0xff]
    %v134 = vld [vmem:[#allocation8 + $0x170] sm:$0xff]
    %v135 = vld [vmem:[#allocation8 + $0x178] sm:$0xff]
    %v136 = vld [vmem:[#allocation8 + $0x180] sm:$0xff]
    %v137 = vld [vmem:[#allocation8 + $0x188] sm:$0xff]
    %v138 = vld [vmem:[#allocation8 + $0x190] sm:$0xff]
    %v139 = vld [vmem:[#allocation8 + $0x198] sm:$0xff]
    %v140 = vld [vmem:[#allocation8 + $0x1a0] sm:$0xff]
    %v141 = vld [vmem:[#allocation8 + $0x1a8] sm:$0xff]
    %v142 = vld [vmem:[%s5] sm:$0x7]
    %v144 = vlaneseq
    %v145 = vshrl.u32 %v144, 7
    %v146 = vsub.s32 0, %v145
    %v147 = vrot.slane %v142, %v146
    %v148 = vlaneseq
    %v149 = vshrl.u32 %v148, 7
    %v150 = vsub.s32 1, %v149
    %v151 = vrot.slane %v142, %v150
    %v152 = vlaneseq
    %v153 = vshrl.u32 %v152, 7
    %v154 = vsub.s32 2, %v153
    %v155 = vrot.slane %v142, %v154
    %vm159 = vcmask 130048
    %v161 = vsel %vm159, %v87, 0
    %163 = vmatprep.subr.mxu0 %v134
    %164 = vmatpush1.msra.mxu0 %v133
    %165 = vmatprep.subr.mxu0 %v131
    %166 = vmatpush1.msra.mxu0 %v130
    %167 = vmatprep.subr.mxu0 %v128
    %168 = vmatpush1.msra.mxu0 %v127
    %169 = vmatprep.subr.mxu0 %v125
    %170 = vmatpush1.msra.mxu0 %v124
    %171 = vmatprep.subr.mxu0 %v122
    %172 = vmatpush1.msra.mxu0 %v121
    %173 = vmatprep.subr.mxu0 %v119
    %174 = vmatpush1.msra.mxu0 %v118
    %175 = vmatprep.subr.mxu0 %v116
    %176 = vmatpush1.msra.mxu0 %v115
    %177 = vmatprep.subr.mxu0 %v113
    %178 = vmatpush1.msra.mxu0 %v112
    %179 = vmatprep.subr.mxu0 %v110
    %180 = vmatpush1.msra.mxu0 %v109
    %181 = vmatprep.subr.mxu0 %v107
    %182 = vmatpush1.msra.mxu0 %v106
    %183 = vmatprep.subr.mxu0 %v104
    %184 = vmatpush1.msra.mxu0 %v103
    %185 = vmatprep.subr.mxu0 %v101
    %186 = vmatpush1.msra.mxu0 %v100
    %187 = vmatprep.subr.mxu0 %v98
    %188 = vmatpush1.msra.mxu0 %v97
    %189 = vmatprep.subr.mxu0 %v95
    %190 = vmatpush1.msra.mxu0 %v94
    %191 = vmatprep.subr.mxu0 %v92
    %192 = vmatpush1.msra.mxu0 %v91
    %193 = vmatprep.subr.mxu0 %v89
    %194 = vmatpush1.msra.mxu0 %v88
    %195 = vmatprep.subr.mxu0 0.0
    %196 = vmatpush2.msra.mxu0 0.0
    %197 = vmatprep.subr.mxu0 0.0
    %198 = vmatpush2.msra.mxu0 0.0
    %199 = vmatprep.subr.mxu0 0.0
    %200 = vmatpush2.msra.mxu0 0.0
    %201 = vmatprep.subr.mxu0 0.0
    %202 = vmatpush2.msra.mxu0 0.0
    %203 = vmatprep.subr.mxu0 0.0
    %204 = vmatpush2.msra.mxu0 0.0
    %205 = vmatprep.subr.mxu0 0.0
    %206 = vmatpush2.msra.mxu0 0.0
    %207 = vmatprep.subr.mxu0 0.0
    %208 = vmatpush2.msra.mxu0 0.0
    %209 = vmatprep.subr.mxu0 0.0
    %210 = vmatpush2.msra.mxu0 0.0
    %211 = vmatprep.subr.mxu0 0.0
    %212 = vmatpush2.msra.mxu0 0.0
    %213 = vmatprep.subr.mxu0 0.0
    %214 = vmatpush2.msra.mxu0 0.0
    %215 = vmatprep.subr.mxu0 0.0
    %216 = vmatpush2.msra.mxu0 0.0
    %217 = vmatprep.subr.mxu0 0.0
    %218 = vmatpush2.msra.mxu0 0.0
    %219 = vmatprep.subr.mxu0 0.0
    %220 = vmatpush2.msra.mxu0 0.0
    %221 = vmatprep.subr.mxu0 0.0
    %222 = vmatpush2.msra.mxu0 0.0
    %223 = vmatprep.subr.mxu0 %v140
    %224 = vmatpush2.msra.mxu0 %v139
    %225 = vmatprep.subr.mxu0 %v137
    %226 = vmatpush2.msra.mxu0 %v136
    %227 = vmatprep.mubr.f32.mxu0 %v161
    %228 = vmatmul.mubr.f32.gmra.mxu0 %v86
    %v229 = vpop.f32.mrf.mxu0
    %v230 = vadd.f32 %v147, %v229
    %v231 = vpop.f32.mrf.mxu0
    %v232 = vadd.f32 %v151, %v231
    %233 = vdwg.mxu0
    %234 = vmatprep.subr.mxu0 0.0
    %235 = vmatpush1.msra.mxu0 %v135
    %236 = vmatprep.subr.mxu0 0.0
    %237 = vmatpush1.msra.mxu0 %v132
    %238 = vmatprep.subr.mxu0 0.0
    %239 = vmatpush1.msra.mxu0 %v129
    %240 = vmatprep.subr.mxu0 0.0
    %241 = vmatpush1.msra.mxu0 %v126
    %242 = vmatprep.subr.mxu0 0.0
    %243 = vmatpush1.msra.mxu0 %v123
    %244 = vmatprep.subr.mxu0 0.0
    %245 = vmatpush1.msra.mxu0 %v120
    %246 = vmatprep.subr.mxu0 0.0
    %247 = vmatpush1.msra.mxu0 %v117
    %248 = vmatprep.subr.mxu0 0.0
    %249 = vmatpush1.msra.mxu0 %v114
    %250 = vmatprep.subr.mxu0 0.0
    %251 = vmatpush1.msra.mxu0 %v111
    %252 = vmatprep.subr.mxu0 0.0
    %253 = vmatpush1.msra.mxu0 %v108
    %254 = vmatprep.subr.mxu0 0.0
    %255 = vmatpush1.msra.mxu0 %v105
    %256 = vmatprep.subr.mxu0 0.0
    %257 = vmatpush1.msra.mxu0 %v102
    %258 = vmatprep.subr.mxu0 0.0
    %259 = vmatpush1.msra.mxu0 %v99
    %260 = vmatprep.subr.mxu0 0.0
    %261 = vmatpush1.msra.mxu0 %v96
    %262 = vmatprep.subr.mxu0 0.0
    %263 = vmatpush1.msra.mxu0 %v93
    %264 = vmatprep.subr.mxu0 0.0
    %265 = vmatpush1.msra.mxu0 %v90
    %266 = vmatprep.subr.mxu0 0.0
    %267 = vmatpush2.msra.mxu0 0.0
    %268 = vmatprep.subr.mxu0 0.0
    %269 = vmatpush2.msra.mxu0 0.0
    %270 = vmatprep.subr.mxu0 0.0
    %271 = vmatpush2.msra.mxu0 0.0
    %272 = vmatprep.subr.mxu0 0.0
    %273 = vmatpush2.msra.mxu0 0.0
    %274 = vmatprep.subr.mxu0 0.0
    %275 = vmatpush2.msra.mxu0 0.0
    %276 = vmatprep.subr.mxu0 0.0
    %277 = vmatpush2.msra.mxu0 0.0
    %278 = vmatprep.subr.mxu0 0.0
    %279 = vmatpush2.msra.mxu0 0.0
    %280 = vmatprep.subr.mxu0 0.0
    %281 = vmatpush2.msra.mxu0 0.0
    %282 = vmatprep.subr.mxu0 0.0
    %283 = vmatpush2.msra.mxu0 0.0
    %284 = vmatprep.subr.mxu0 0.0
    %285 = vmatpush2.msra.mxu0 0.0
    %286 = vmatprep.subr.mxu0 0.0
    %287 = vmatpush2.msra.mxu0 0.0
    %288 = vmatprep.subr.mxu0 0.0
    %289 = vmatpush2.msra.mxu0 0.0
    %290 = vmatprep.subr.mxu0 0.0
    %291 = vmatpush2.msra.mxu0 0.0
    %292 = vmatprep.subr.mxu0 0.0
    %293 = vmatpush2.msra.mxu0 0.0
    %294 = vmatprep.subr.mxu0 0.0
    %295 = vmatpush2.msra.mxu0 %v141
    %296 = vmatprep.subr.mxu0 0.0
    %297 = vmatpush2.msra.mxu0 %v138
    %298 = vmatprep.mubr.f32.mxu0 %v161
    %299 = vmatmul.mubr.f32.gmra.mxu0 %v86
    %v300 = vpop.f32.mrf.mxu0
    %v301 = vadd.f32 %v155, %v300
    %v302 = vpop.f32.mrf.mxu0
    %303 = vdwg.mxu0
    %v304 = vld [vmem:[#allocation5] sm:$0xff]
    %v305 = vld [vmem:[#allocation10] sm:$0xff]
    %v306 = vld [vmem:[#allocation10 + $0x8] sm:$0xff]
    %v307 = vld [vmem:[#allocation10 + $0x10] sm:$0xff]
    %v308 = vld [vmem:[#allocation10 + $0x18] sm:$0xff]
    %v309 = vld [vmem:[#allocation10 + $0x20] sm:$0xff]
    %v310 = vld [vmem:[#allocation10 + $0x28] sm:$0xff]
    %v311 = vld [vmem:[#allocation10 + $0x30] sm:$0xff]
    %v312 = vld [vmem:[#allocation10 + $0x38] sm:$0xff]
    %v313 = vld [vmem:[#allocation10 + $0x40] sm:$0xff]
    %v314 = vld [vmem:[#allocation10 + $0x48] sm:$0xff]
    %v315 = vld [vmem:[#allocation10 + $0x50] sm:$0xff]
    %v316 = vld [vmem:[#allocation10 + $0x58] sm:$0xff]
    %v317 = vld [vmem:[#allocation10 + $0x60] sm:$0xff]
    %v318 = vld [vmem:[#allocation10 + $0x68] sm:$0xff]
    %v319 = vld [vmem:[#allocation10 + $0x70] sm:$0xff]
    %v320 = vld [vmem:[#allocation10 + $0x78] sm:$0xff]
    %v321 = vld [vmem:[#allocation10 + $0x80] sm:$0xff]
    %v322 = vld [vmem:[#allocation10 + $0x88] sm:$0xff]
    %v323 = vld [vmem:[#allocation10 + $0x90] sm:$0xff]
    %v324 = vld [vmem:[#allocation10 + $0x98] sm:$0xff]
    %v325 = vld [vmem:[#allocation10 + $0xa0] sm:$0xff]
    %v326 = vld [vmem:[#allocation10 + $0xa8] sm:$0xff]
    %v327 = vld [vmem:[#allocation10 + $0xb0] sm:$0xff]
    %v328 = vld [vmem:[#allocation10 + $0xb8] sm:$0xff]
    %v329 = vld [vmem:[#allocation10 + $0xc0] sm:$0xff]
    %v330 = vld [vmem:[#allocation10 + $0xc8] sm:$0xff]
    %v331 = vld [vmem:[#allocation10 + $0xd0] sm:$0xff]
    %v332 = vld [vmem:[#allocation10 + $0xd8] sm:$0xff]
    %v333 = vld [vmem:[#allocation10 + $0xe0] sm:$0xff]
    %v334 = vld [vmem:[#allocation10 + $0xe8] sm:$0xff]
    %v335 = vld [vmem:[#allocation10 + $0xf0] sm:$0xff]
    %v336 = vld [vmem:[#allocation10 + $0xf8] sm:$0xff]
    %337 = vmatprep.subr.mxu0 %v336
    %338 = vmatpush1.msra.mxu0 %v335
    %339 = vmatprep.subr.mxu0 %v334
    %340 = vmatpush1.msra.mxu0 %v333
    %341 = vmatprep.subr.mxu0 %v332
    %342 = vmatpush1.msra.mxu0 %v331
    %343 = vmatprep.subr.mxu0 %v330
    %344 = vmatpush1.msra.mxu0 %v329
    %345 = vmatprep.subr.mxu0 %v328
    %346 = vmatpush1.msra.mxu0 %v327
    %347 = vmatprep.subr.mxu0 %v326
    %348 = vmatpush1.msra.mxu0 %v325
    %349 = vmatprep.subr.mxu0 %v324
    %350 = vmatpush1.msra.mxu0 %v323
    %351 = vmatprep.subr.mxu0 %v322
    %352 = vmatpush1.msra.mxu0 %v321
    %353 = vmatprep.subr.mxu0 %v320
    %354 = vmatpush1.msra.mxu0 %v319
    %355 = vmatprep.subr.mxu0 %v318
    %356 = vmatpush1.msra.mxu0 %v317
    %357 = vmatprep.subr.mxu0 %v316
    %358 = vmatpush1.msra.mxu0 %v315
    %359 = vmatprep.subr.mxu0 %v314
    %360 = vmatpush1.msra.mxu0 %v313
    %361 = vmatprep.subr.mxu0 %v312
    %362 = vmatpush1.msra.mxu0 %v311
    %363 = vmatprep.subr.mxu0 %v310
    %364 = vmatpush1.msra.mxu0 %v309
    %365 = vmatprep.subr.mxu0 %v308
    %366 = vmatpush1.msra.mxu0 %v307
    %367 = vmatprep.subr.mxu0 %v306
    %368 = vmatpush1.msra.mxu0 %v305
    %369 = vmatprep.subr.mxu0 0.0
    %370 = vmatpush2.msra.mxu0 0.0
    %371 = vmatprep.subr.mxu0 0.0
    %372 = vmatpush2.msra.mxu0 0.0
    %373 = vmatprep.subr.mxu0 0.0
    %374 = vmatpush2.msra.mxu0 0.0
    %375 = vmatprep.subr.mxu0 0.0
    %376 = vmatpush2.msra.mxu0 0.0
    %377 = vmatprep.subr.mxu0 0.0
    %378 = vmatpush2.msra.mxu0 0.0
    %379 = vmatprep.subr.mxu0 0.0
    %380 = vmatpush2.msra.mxu0 0.0
    %381 = vmatprep.subr.mxu0 0.0
    %382 = vmatpush2.msra.mxu0 0.0
    %383 = vmatprep.subr.mxu0 0.0
    %384 = vmatpush2.msra.mxu0 0.0
    %385 = vmatprep.subr.mxu0 0.0
    %386 = vmatpush2.msra.mxu0 0.0
    %387 = vmatprep.subr.mxu0 0.0
    %388 = vmatpush2.msra.mxu0 0.0
    %389 = vmatprep.subr.mxu0 0.0
    %390 = vmatpush2.msra.mxu0 0.0
    %391 = vmatprep.subr.mxu0 0.0
    %392 = vmatpush2.msra.mxu0 0.0
    %393 = vmatprep.subr.mxu0 0.0
    %394 = vmatpush2.msra.mxu0 0.0
    %395 = vmatprep.subr.mxu0 0.0
    %396 = vmatpush2.msra.mxu0 0.0
    %397 = vmatprep.subr.mxu0 0.0
    %398 = vmatpush2.msra.mxu0 0.0
    %399 = vmatprep.subr.mxu0 0.0
    %400 = vmatpush2.msra.mxu0 0.0
    %401 = vmatprep.mubr.f32.mxu0 0.0
    %402 = vmatmul.mubr.f32.gmra.mxu0 %v304
    %v403 = vpop.f32.mrf.mxu0
    %v404 = vadd.f32 0.0, %v403
    %v405 = vpop.f32.mrf.mxu0
    %v406 = vadd.f32 0.0, %v405
    %407 = vdwg.mxu0
    %v408 = vadd.f32 %v230, %v404
    %v409 = vadd.f32 %v232, %v406
    %v410 = vxor.u32 %v408, 2147483648
    %v411 = vmul.f32 %v410, 1.442695
    %v412 = vpow.pop %v411
    %v413 = vadd.f32 %v412, 1.0
    %v414 = vrcp.pop %v413
    %v415 = vmul.f32 1.0, %v414
    %v416 = vxor.u32 %v409, 2147483648
    %v417 = vmul.f32 %v416, 1.442695
    %v418 = vpow.pop %v417
    %v419 = vadd.f32 %v418, 1.0
    %v420 = vrcp.pop %v419
    %v421 = vmul.f32 1.0, %v420
    %v422 = vtanh.pop %v301
    %v423 = vld [vmem:[#allocation7] sm:$0xff]
    %v424 = vmul.f32 %v415, %v423
    %v425 = vmul.f32 %v421, %v422
    %v426 = vsub.f32 %v424, %v425
    %427 = vst [vmem:[#allocation11] sm:$0xff] %v422
    %428 = vst [vmem:[#allocation11 + $0x8] sm:$0xff] %v426
    // Predicated region
    $region46: #{tpu_custom_call.1} parent=1 // pred_check
      _
    $region47: #{tpu_custom_call.1} parent=1 // pred_check_branch
      %430 = sbr.rel (0) target = $region49
    $region48: #{tpu_custom_call.1} parent=1 // pred_region
      %s432 = ssub.s32 256, 256
      %433 = vsyncadd [#allocation4], %s432
      %s435 = sshll.u32 [#allocation11], 4
      %s436 = int_to_ptr.vmem [resolvable:$true] %s435
      %438 = dma.vmem_to_hbm [thread:$0]  %s436, 256, %s6, [#allocation4]
    $region49: #{tpu_custom_call.1} parent=1 // pred_fallthru
      _
    // Predicated region
    $region50: #{tpu_custom_call.1} parent=1 // pred_check
      _
    $region51: #{tpu_custom_call.1} parent=1 // pred_check_branch
      %440 = sbr.rel (0) target = $region53
    $region52: #{tpu_custom_call.1} parent=1 // pred_region
      %441 = dma.done [#allocation4], 256
    $region53: #{tpu_custom_call.1} parent=1 // pred_fallthru
      _
    %442 = vsyncpa [#allocation3], 1
    %443 = vsyncpa [#allocation6], 1
    %444 = vsyncpa [#allocation9], 1
    %445 = vsyncpa [#allocation4], 1

</llo_original>
